<compile_context>
chip_gen: v7x
topology: tpu7x:2x2x1
jax: 0.10.0
libtpu: 0.0.40
codegen_flags: <defaults>
</compile_context>

<pallas_src>
import functools

import jax
import jax.numpy as jnp
from jax.experimental import pallas as pl
from jax.experimental.pallas import tpu as pltpu


def _ce_label_smooth_kernel(logits_ref, targets_ref, out_ref, *,
                            epsilon, num_classes, batch, tile_b, needs_mask):
    x = logits_ref[...].astype(jnp.float32)       # (TB, C), f32 math
    tgt = targets_ref[...]                        # (TB, 1) int32
    tb, c = x.shape

    if needs_mask:
        # Global row index of each row in this tile; rows >= batch are padding.
        row_ids = (jax.lax.broadcasted_iota(jnp.int32, (tb, 1), 0)
                   + pl.program_id(0) * tile_b)
        row_mask = row_ids < batch                # (TB, 1)
        # Zero padded rows so the softmax math stays finite.
        x = jnp.where(row_mask, x, 0.0)

    # Numerically-stable log-sum-exp along classes (lane axis).
    row_max = jnp.max(x, axis=1, keepdims=True)   # (TB, 1)
    shifted = x - row_max
    lse = jnp.log(jnp.sum(jnp.exp(shifted), axis=1, keepdims=True))  # (TB, 1)

    # Shifted logit at the target class via an iota predicate (no one_hot /
    # smoothed / log_probs temporaries are materialized).
    class_ids = jax.lax.broadcasted_iota(jnp.int32, (tb, c), 1)
    shifted_t = jnp.sum(jnp.where(class_ids == tgt, shifted, 0.0),
                        axis=1, keepdims=True)    # (TB, 1)
    sum_shifted = jnp.sum(shifted, axis=1, keepdims=True)             # (TB, 1)

    eps = epsilon
    per_sample = ((1.0 - eps) * (lse - shifted_t)
                  + eps * lse
                  - (eps / num_classes) * sum_shifted)                # (TB, 1)

    if needs_mask:
        per_sample = jnp.where(row_mask, per_sample, 0.0)

    partial = jnp.sum(per_sample)                 # scalar sum over this tile
    # Lane-dense, unmasked store of the per-tile partial sum.
    out_ref[...] = jnp.broadcast_to(partial, out_ref.shape)


def _choose_tile_b(batch, num_classes, in_bytes, budget_bytes=24 << 20):
    # Per-row VMEM footprint: double-buffered input block + ~4 f32 in-kernel
    # temporaries (+ the tiny targets column).  Budget leaves headroom under
    # the 48 MiB scoped limit set below (safe on v7x's 64 MiB physical VMEM).
    per_row = num_classes * (2 * in_bytes + 4 * 4) + 8
    tb = max(1, budget_bytes // per_row)
    if tb >= batch:
        return batch                      # whole batch in one tile
    tb = min(tb, 1024)
    return max(8, (tb // 8) * 8)          # sublane-aligned tiles


def cross_entropy_label_smooth(inputs, targets, *, num_classes, epsilon=0.1,
                               tile_b=None):
    """inputs: (B, C) float logits; targets: (B,) int class indices.

    Returns the scalar label-smoothed cross-entropy loss (batch mean).
    """
    B, C = inputs.shape
    assert C == num_classes
    targets_2d = targets.astype(jnp.int32).reshape(B, 1)

    if tile_b is None:
        tile_b = _choose_tile_b(B, C, inputs.dtype.itemsize)
    tile_b = int(min(tile_b, B))
    num_tiles = pl.cdiv(B, tile_b)
    needs_mask = (B % tile_b) != 0

    kernel = functools.partial(
        _ce_label_smooth_kernel,
        epsilon=float(epsilon),
        num_classes=int(num_classes),
        batch=int(B),
        tile_b=tile_b,
        needs_mask=bool(needs_mask),
    )

    # TODO(synk): for very large C (vocab >= ~16K, first binding on v7x's
    # 64 MiB VMEM), add an inner "arbitrary" class-tile grid axis with an
    # online log-sum-exp instead of a single (TB, C) class block.
    partials = pl.pallas_call(
        kernel,
        out_shape=jax.ShapeDtypeStruct((num_tiles, 8, 128), jnp.float32),
        grid_spec=pltpu.PrefetchScalarGridSpec(
            num_scalar_prefetch=0,
            grid=(num_tiles,),
            in_specs=[
                pl.BlockSpec((tile_b, C), lambda i: (i, 0)),
                pl.BlockSpec((tile_b, 1), lambda i: (i, 0)),
            ],
            out_specs=pl.BlockSpec((1, 8, 128), lambda i: (i, 0, 0)),
        ),
        compiler_params=pltpu.CompilerParams(
            dimension_semantics=("parallel",),
            vmem_limit_bytes=48 << 20,
        ),
    )(inputs, targets_2d)

    return jnp.sum(partials[:, 0, 0]) / B


def _reference(inputs, targets, num_classes, epsilon=0.1):
    log_probs = jax.nn.log_softmax(inputs.astype(jnp.float32), axis=1)
    one_hot = jax.nn.one_hot(targets, num_classes, dtype=jnp.float32)
    smoothed = (1.0 - epsilon) * one_hot + epsilon / num_classes
    return jnp.mean(jnp.sum(-smoothed * log_probs, axis=1))


if __name__ == "__main__":
    epsilon = 0.1
    key = jax.random.PRNGKey(0)
    k1, k2, k3, k4 = jax.random.split(key, 4)

    # Case 1: small single-tile shape (typical module usage scale).
    num_classes = 16
    batch = 8
    logits = jax.random.normal(k1, (batch, num_classes), dtype=jnp.float32)
    targets = jax.random.randint(k2, (batch,), 0, num_classes, dtype=jnp.int32)
    loss = cross_entropy_label_smooth(
        logits, targets, num_classes=num_classes, epsilon=epsilon)
    loss = jax.block_until_ready(loss)
    ref = _reference(logits, targets, num_classes, epsilon)
    assert jnp.allclose(loss, ref, atol=1e-4, rtol=1e-5), (loss, ref)

    # Case 2: multi-tile grid with a ragged last tile (exercises masking +
    # the "parallel" batch axis / lane-dense partial-sum output path).
    num_classes2 = 256
    batch2 = 20
    logits2 = jax.random.normal(k3, (batch2, num_classes2), dtype=jnp.float32)
    targets2 = jax.random.randint(k4, (batch2,), 0, num_classes2,
                                  dtype=jnp.int32)
    loss2 = cross_entropy_label_smooth(
        logits2, targets2, num_classes=num_classes2, epsilon=epsilon, tile_b=8)
    loss2 = jax.block_until_ready(loss2)
    ref2 = _reference(logits2, targets2, num_classes2, epsilon)
    assert jnp.allclose(loss2, ref2, atol=1e-4, rtol=1e-5), (loss2, ref2)

    print("KERNEL_OK")
</pallas_src>

<mosaic_0001>
module attributes {stable_mosaic.version = 11 : i64} {
  func.func @_ce_label_smooth_kernel(%arg0: i32, %arg1: memref<8x16xf32, #tpu.memory_space<vmem>>, %arg2: memref<8x1xi32, #tpu.memory_space<vmem>>, %arg3: memref<1x8x128xf32, #tpu.memory_space<vmem>>) attributes {dimension_semantics = [#tpu.dimension_semantics<parallel>], iteration_bounds = array<i64: 1>, scalar_prefetch = 0 : i64, scratch_operands = 0 : i64, tpu.core_type = #tpu.core_type<tc>, window_params = [{transform_indices = @transform_0, window_bounds = array<i64: 8, 16>}, {transform_indices = @transform_1, window_bounds = array<i64: 8, 1>}, {transform_indices = @transform_2, window_bounds = array<i64: 1, 8, 128>}]} {
    %c0 = arith.constant 0 : index
    %c0_0 = arith.constant 0 : index
    %0 = vector.load %arg1[%c0, %c0_0] : memref<8x16xf32, #tpu.memory_space<vmem>>, vector<8x16xf32>
    %c0_1 = arith.constant 0 : index
    %c0_2 = arith.constant 0 : index
    %1 = vector.load %arg2[%c0_1, %c0_2] : memref<8x1xi32, #tpu.memory_space<vmem>>, vector<8x1xi32>
    %cst = arith.constant dense<0xFF800000> : vector<8xf32>
    %2 = vector.multi_reduction <maximumf>, %0, %cst [1] : vector<8x16xf32> to vector<8xf32>
    %3 = vector.shape_cast %2 : vector<8xf32> to vector<8x1xf32>
    %4 = vector.broadcast %3 : vector<8x1xf32> to vector<8x16xf32>
    %5 = arith.subf %0, %4 : vector<8x16xf32>
    %6 = math.exp %5 : vector<8x16xf32>
    %cst_3 = arith.constant dense<0.000000e+00> : vector<8xf32>
    %7 = vector.multi_reduction <add>, %6, %cst_3 [1] : vector<8x16xf32> to vector<8xf32>
    %8 = vector.shape_cast %7 : vector<8xf32> to vector<8x1xf32>
    %9 = math.log %8 : vector<8x1xf32>
    %10 = tpu.iota {dimensions = array<i32: 1>} : vector<8x16xi32>
    %11 = vector.broadcast %1 : vector<8x1xi32> to vector<8x16xi32>
    %12 = arith.cmpi eq, %10, %11 : vector<8x16xi32>
    %cst_4 = arith.constant 0.000000e+00 : f32
    %13 = vector.broadcast %cst_4 : f32 to vector<8x16xf32>
    %14 = arith.select %12, %5, %13 : vector<8x16xi1>, vector<8x16xf32>
    %cst_5 = arith.constant dense<0.000000e+00> : vector<8xf32>
    %15 = vector.multi_reduction <add>, %14, %cst_5 [1] : vector<8x16xf32> to vector<8xf32>
    %16 = vector.shape_cast %15 : vector<8xf32> to vector<8x1xf32>
    %cst_6 = arith.constant dense<0.000000e+00> : vector<8xf32>
    %17 = vector.multi_reduction <add>, %5, %cst_6 [1] : vector<8x16xf32> to vector<8xf32>
    %18 = vector.shape_cast %17 : vector<8xf32> to vector<8x1xf32>
    %19 = arith.subf %9, %16 : vector<8x1xf32>
    %cst_7 = arith.constant 0.899999976 : f32
    %20 = vector.broadcast %cst_7 : f32 to vector<8x1xf32>
    %21 = arith.mulf %20, %19 : vector<8x1xf32>
    %cst_8 = arith.constant 1.000000e-01 : f32
    %22 = vector.broadcast %cst_8 : f32 to vector<8x1xf32>
    %23 = arith.mulf %22, %9 : vector<8x1xf32>
    %24 = arith.addf %21, %23 : vector<8x1xf32>
    %cst_9 = arith.constant 6.250000e-03 : f32
    %25 = vector.broadcast %cst_9 : f32 to vector<8x1xf32>
    %26 = arith.mulf %25, %18 : vector<8x1xf32>
    %27 = arith.subf %24, %26 : vector<8x1xf32>
    %28 = vector.shape_cast %27 : vector<8x1xf32> to vector<1x8x1xf32>
    %cst_10 = arith.constant dense<0.000000e+00> : vector<1xf32>
    %29 = vector.multi_reduction <add>, %28, %cst_10 [1, 2] : vector<1x8x1xf32> to vector<1xf32>
    %30 = vector.shape_cast %29 : vector<1xf32> to vector<1x1x1xf32>
    %31 = vector.extract %30[0, 0, 0] : f32 from vector<1x1x1xf32>
    %32 = vector.broadcast %31 : f32 to vector<1x8x128xf32>
    %c0_11 = arith.constant 0 : index
    %c0_12 = arith.constant 0 : index
    %c0_13 = arith.constant 0 : index
    %33 = vector.load %arg3[%c0_11, %c0_12, %c0_13] : memref<1x8x128xf32, #tpu.memory_space<vmem>>, vector<1x8x128xf32>
    tpu.vector_store %arg3[%c0_11, %c0_12, %c0_13], %32 {strides = array<i32>} : memref<1x8x128xf32, #tpu.memory_space<vmem>>, vector<1x8x128xf32>,
    return
  }
  func.func @transform_0(%arg0: i32) -> (i32, i32) {
    %c0_i32 = arith.constant 0 : i32
    %c0_i32_0 = arith.constant 0 : i32
    return %arg0, %c0_i32 : i32, i32
  }
  func.func @transform_1(%arg0: i32) -> (i32, i32) {
    %c0_i32 = arith.constant 0 : i32
    %c0_i32_0 = arith.constant 0 : i32
    return %arg0, %c0_i32 : i32, i32
  }
  func.func @transform_2(%arg0: i32) -> (i32, i32, i32) {
    %c0_i32 = arith.constant 0 : i32
    %c0_i32_0 = arith.constant 0 : i32
    %c0_i32_1 = arith.constant 0 : i32
    return %arg0, %c0_i32, %c0_i32_0 : i32, i32, i32
  }
}

</mosaic_0001>

<llo_original>
// kernel: tpu_custom_call.1
$region0: #{tpu_custom_call.1}
  #allocation0 [shape = 'u32[]', space=smem, size = 0x4, offset = 0x4, fixed_abs, tag = 'smem constant byte address 0x4 - core index']
  #allocation1 [shape = 'u32[144,128]{1,0:T(1,128)}', space=vmem, size = 0x12000, scoped, tag = 'internal scratch']
  %s0 = inlined_call_operand.vmem [shape: f32[8,16], index: 0, kind: input, shape index: {}]
  %s1 = inlined_call_operand.vmem [shape: s32[8,1], index: 1, kind: input, shape index: {}]
  %s2 = inlined_call_operand.hbm [shape: f32[1,8,128], index: 2, kind: output, shape index: {}]
  %s3 = sld [smem:[#allocation0]]
  $region18: #{tpu_custom_call.1} parent=0
    _
  %s5 = ssub.s32 1, %s3
  %s6 = scalar_select 0, %s5, %s3
  $region1: #{tpu_custom_call.1} parent=0
    #allocation2 [shape = 'u8[4096]{0}', space=vmem, size = 0x1000, scoped, tag = 'output window, operand 0, single buffered']
    #allocation3 [shape = 's32[1]{0}', space=sflag, size = 0x4, scoped, tag = 'scoped memory for tpu_custom_call.1']
    %7 = vsyncpa [#allocation3], 0
    // Predicated region
    $region2: #{tpu_custom_call.1} parent=1 // pred_check
      _
    $region3: #{tpu_custom_call.1} parent=1 // pred_check_branch
      %9 = sbr.rel (0) target = $region5
    $region4: #{tpu_custom_call.1} parent=1 // pred_region
      _
    $region5: #{tpu_custom_call.1} parent=1 // pred_fallthru
      _
    // Predicated region
    $region6: #{tpu_custom_call.1} parent=1 // pred_check
      _
    $region7: #{tpu_custom_call.1} parent=1 // pred_check_branch
      %11 = sbr.rel (0) target = $region9
    $region8: #{tpu_custom_call.1} parent=1 // pred_region
      _
    $region9: #{tpu_custom_call.1} parent=1 // pred_fallthru
      _
    %v12 = vld [vmem:[%s0] sm:$0xff]
    %v13 = vld [vmem:[%s1] sm:$0xff]
    %vm14 = vcmask 130048
    %v15 = vsel %vm14, %v12, -inf
    %16 = vmax.xlane.f32.xlu0 %v15
    %v17 = vpop.xlane.xlu0 %16
    %v18 = vsub.f32 %v12, %v17
    %v19 = vmul.f32 %v18, 1.442695
    %v20 = vpow.pop %v19
    %v21 = vsel %vm14, %v20, 0.0
    %22 = vadd.xlane.f32.xlu0 %v21
    %v23 = vpop.xlane.xlu0 %22
    %v24 = vlog2.pop %v23
    %v25 = vmul.f32 %v24, 0.6931472
    %v26 = vlaneseq
    %v27 = vand.u32 %v26, 127
    %28 = vset.pattern.permute.xlu0 0
    %29 = vperm.xlu0 %28, %v13
    %v30 = vpop.permute.xlu0 %29
    %vm31 = vcmp.eq.s32.totalorder %v27, %v30
    %v32 = vsel %vm31, %v18, 0.0
    %v33 = vsel %vm14, %v32, 0.0
    %34 = vadd.xlane.f32.xlu0 %v33
    %v35 = vpop.xlane.xlu0 %34
    %v36 = vsel %vm14, %v18, 0.0
    %37 = vadd.xlane.f32.xlu0 %v36
    %v38 = vpop.xlane.xlu0 %37
    %v39 = vsub.f32 %v25, %v35
    %v40 = vmul.f32 %v39, 0.9
    %v41 = vmul.f32 %v25, 0.1
    %v42 = vadd.f32 %v40, %v41
    %v43 = vmul.f32 %v38, 0.00625
    %v44 = vsub.f32 %v42, %v43
    %vm45 = vcmask 7168
    %v46 = vsel %vm45, %v44, 0.0
    %47 = vadd.xlane.f32.xlu0 %v46
    %v48 = vpop.xlane.xlu0 %47
    %v49 = vrot.slane %v48, 4
    %v50 = vadd.f32 %v48, %v49
    %v51 = vrot.slane %v50, 2
    %v52 = vadd.f32 %v50, %v51
    %v53 = vrot.slane %v52, 1
    %v54 = vadd.f32 %v52, %v53
    %s55 = vtos %v54
    %v56 = vstv %s55
    %57 = vst [vmem:[#allocation2] sm:$0xff] %v56
    // Predicated region
    $region10: #{tpu_custom_call.1} parent=1 // pred_check
      _
    $region11: #{tpu_custom_call.1} parent=1 // pred_check_branch
      %59 = sbr.rel (0) target = $region13
    $region12: #{tpu_custom_call.1} parent=1 // pred_region
      %s61 = ssub.s32 128, 128
      %62 = vsyncadd [#allocation3], %s61
      %s64 = sshll.u32 [#allocation2], 4
      %s65 = int_to_ptr.vmem [resolvable:$true] %s64
      %67 = dma.vmem_to_hbm [thread:$0]  %s65, 128, %s2, [#allocation3]
    $region13: #{tpu_custom_call.1} parent=1 // pred_fallthru
      _
    // Predicated region
    $region14: #{tpu_custom_call.1} parent=1 // pred_check
      _
    $region15: #{tpu_custom_call.1} parent=1 // pred_check_branch
      %69 = sbr.rel (0) target = $region17
    $region16: #{tpu_custom_call.1} parent=1 // pred_region
      %70 = dma.done [#allocation3], 128
    $region17: #{tpu_custom_call.1} parent=1 // pred_fallthru
      _
    %71 = vsyncpa [#allocation3], 1

</llo_original>
